<compile_context>
chip_gen: v7x
topology: tpu7x:2x2x1
jax: 0.10.0
libtpu: 0.0.40
codegen_flags: <defaults>
</compile_context>

<pallas_src>
import functools

import jax
import jax.numpy as jnp
from jax.experimental import pallas as pl
from jax.experimental.pallas import tpu as pltpu


def _round_up(x, m):
    return ((x + m - 1) // m) * m


def _trigger_mlp_kernel(x_ref, w1_ref, b1_ref, w2_ref, b2_ref, o_ref):
    # x_ref:  (tile_n, Dp)    w1_ref: (Dp, Hp)    b1_ref: (1, Hp)
    # w2_ref: (Hp, D_out)     b2_ref: (1, D_out)  o_ref:  (tile_n, D_out)
    x = x_ref[...].astype(w1_ref.dtype)          # cast on VPU (bf16 path); no extra HBM pass
    h = jnp.dot(x, w1_ref[...], preferred_element_type=jnp.float32) + b1_ref[...]
    h = jnp.maximum(h, 0.0)                      # ReLU in f32
    h = h.astype(w2_ref.dtype)                   # operand dtype for second MXU pass
    y = jnp.dot(h, w2_ref[...], preferred_element_type=jnp.float32) + b2_ref[...]
    o_ref[...] = y.astype(o_ref.dtype)           # single store, bias fused


def prepare_params(w1, b1, w2, b2, *, compute_dtype=jnp.float32, lane_multiple=128):
    """One-time weight prep (run at parameter init, NOT per forward call).

    Layout: w1 (D_in, H), b1 (H,), w2 (H, D_in), b2 (D_in,)   i.e. (in, out).
    Pads only the contraction dims (D_in rows of W1, H) so padded contributions are
    exactly zero; the output dim (W2 columns, b2) stays unpadded.
    # TODO(synk): at production dims on v6e/v7x prefer lane_multiple=256 (2x256^2 MXU).
    """
    d_in, h = w1.shape
    d_pad = _round_up(d_in, lane_multiple)
    h_pad = _round_up(h, lane_multiple)
    w1_p = jnp.pad(w1, ((0, d_pad - d_in), (0, h_pad - h))).astype(compute_dtype)
    w2_p = jnp.pad(w2, ((0, h_pad - h), (0, 0))).astype(compute_dtype)
    b1_p = jnp.pad(b1, (0, h_pad - h)).reshape(1, h_pad).astype(jnp.float32)
    b2_p = jnp.asarray(b2).reshape(1, d_in).astype(jnp.float32)
    return w1_p, b1_p, w2_p, b2_p


def _choose_tile(n, tile_n):
    """Batch tile: big (>=512 rows ~85% of HBM roofline) but >=2 blocks when n > 8 so both
    v7x TensorCores get work; block dims stay multiples of 8 (or equal the full dim)."""
    if n <= 8:
        return n                                  # single block; block dim == full dim is legal
    tile_n = max(8, (tile_n // 8) * 8)
    half = _round_up(-(-n // 2), 8)               # ceil(n/2) rounded to sublane multiple
    return min(tile_n, half)


@functools.partial(jax.jit, static_argnames=("tile_n",))
def trigger_generator_forward(x, w1_p, b1_p, w2_p, b2_p, *, tile_n=512):
    """Fused MLP forward:  y = ReLU(x @ W1 + b1) @ W2 + b2.

    x: (N, D_in); params come from prepare_params().  Returns (N, D_in) in x.dtype.
    """
    n, d_in = x.shape
    d_pad, h_pad = w1_p.shape
    d_out = w2_p.shape[1]

    # Only x's contraction dim is padded; no-op (elided by XLA) when already lane-aligned.
    x_p = x if d_in == d_pad else jnp.pad(x, ((0, 0), (0, d_pad - d_in)))

    eff_tile = _choose_tile(n, tile_n)
    grid = (pl.cdiv(n, eff_tile),)                # partial last block is masked by Pallas

    # Explicit VMEM budget: double-buffered x/out tiles + (double-buffered) resident weights.
    itemsize_in = jnp.dtype(x_p.dtype).itemsize
    itemsize_w = jnp.dtype(w1_p.dtype).itemsize
    itemsize_out = jnp.dtype(x.dtype).itemsize
    need = (2 * eff_tile * d_pad * itemsize_in
            + 2 * eff_tile * d_out * itemsize_out
            + 2 * (w1_p.size + w2_p.size) * itemsize_w
            + 2 * (b1_p.size + b2_p.size) * 4
            + (2 << 20))
    vmem_limit = int(min(max(need, 32 * 1024 * 1024), 56 * 1024 * 1024))

    return pl.pallas_call(
        _trigger_mlp_kernel,
        out_shape=jax.ShapeDtypeStruct((n, d_out), x.dtype),
        grid_spec=pltpu.PrefetchScalarGridSpec(
            num_scalar_prefetch=0,
            grid=grid,
            in_specs=[
                pl.BlockSpec((eff_tile, d_pad), lambda i: (i, 0)),   # x tile
                pl.BlockSpec((d_pad, h_pad), lambda i: (0, 0)),      # W1 (VMEM-resident)
                pl.BlockSpec((1, h_pad), lambda i: (0, 0)),          # b1
                pl.BlockSpec((h_pad, d_out), lambda i: (0, 0)),      # W2 (VMEM-resident)
                pl.BlockSpec((1, d_out), lambda i: (0, 0)),          # b2
            ],
            out_specs=pl.BlockSpec((eff_tile, d_out), lambda i: (i, 0)),
        ),
        compiler_params=pltpu.CompilerParams(
            dimension_semantics=("parallel",),    # batch blocks shard across TCs on v7x
            vmem_limit_bytes=vmem_limit,
        ),
    )(x_p, w1_p, b1_p, w2_p, b2_p)


def init_params(key, input_dim, hidden_dim, dtype=jnp.float32):
    """PyTorch-style (uniform +/- 1/sqrt(fan_in)) init, stored as (in, out)."""
    k1, k2, k3, k4 = jax.random.split(key, 4)
    lim1 = 1.0 / jnp.sqrt(input_dim)
    lim2 = 1.0 / jnp.sqrt(hidden_dim)
    w1 = jax.random.uniform(k1, (input_dim, hidden_dim), dtype, -lim1, lim1)
    b1 = jax.random.uniform(k2, (hidden_dim,), dtype, -lim1, lim1)
    w2 = jax.random.uniform(k3, (hidden_dim, input_dim), dtype, -lim2, lim2)
    b2 = jax.random.uniform(k4, (input_dim,), dtype, -lim2, lim2)
    return w1, b1, w2, b2


def _reference(x, w1, b1, w2, b2):
    return jnp.maximum(x @ w1 + b1, 0.0) @ w2 + b2


if __name__ == "__main__":
    key = jax.random.PRNGKey(0)
    kx1, kp1, kx2, kp2, kx3 = jax.random.split(key, 5)

    # Case 1: f32, "nice" shapes (module's intended use).
    batch, input_dim, hidden_dim = 16, 32, 64
    x = jax.random.normal(kx1, (batch, input_dim), jnp.float32)
    w1, b1, w2, b2 = init_params(kp1, input_dim, hidden_dim)
    params = prepare_params(w1, b1, w2, b2)                 # one-time weight prep
    out = jax.block_until_ready(trigger_generator_forward(x, *params))
    ref = _reference(x, w1, b1, w2, b2)
    assert out.shape == (batch, input_dim)
    assert jnp.allclose(out, ref, atol=1e-4, rtol=1e-4)

    # Case 2: f32, awkward non-multiple shapes (partial batch block + narrow masked store).
    batch2, input_dim2, hidden_dim2 = 10, 20, 48
    x2 = jax.random.normal(kx2, (batch2, input_dim2), jnp.float32)
    w1b, b1b, w2b, b2b = init_params(kp2, input_dim2, hidden_dim2)
    params2 = prepare_params(w1b, b1b, w2b, b2b)
    out2 = jax.block_until_ready(trigger_generator_forward(x2, *params2))
    ref2 = _reference(x2, w1b, b1b, w2b, b2b)
    assert out2.shape == (batch2, input_dim2)
    assert jnp.allclose(out2, ref2, atol=1e-4, rtol=1e-4)

    # Case 3: bf16 operands (recommended default on v6e/v7x), f32 accumulation.
    x3 = jax.random.normal(kx3, (batch, input_dim), jnp.float32)
    params3 = prepare_params(w1, b1, w2, b2, compute_dtype=jnp.bfloat16)
    out3 = jax.block_until_ready(trigger_generator_forward(x3, *params3))
    ref3 = _reference(x3, w1, b1, w2, b2)
    assert out3.shape == (batch, input_dim)
    assert jnp.allclose(out3, ref3, atol=2e-2, rtol=2e-2)   # mixed-precision tolerance

    print("KERNEL_OK")
</pallas_src>

<mosaic_0001>
module attributes {stable_mosaic.version = 11 : i64} {
  func.func @_trigger_mlp_kernel(%arg0: i32, %arg1: memref<8x128xf32, #tpu.memory_space<vmem>>, %arg2: memref<128x128xf32, #tpu.memory_space<vmem>>, %arg3: memref<1x128xf32, #tpu.memory_space<vmem>>, %arg4: memref<128x32xf32, #tpu.memory_space<vmem>>, %arg5: memref<1x32xf32, #tpu.memory_space<vmem>>, %arg6: memref<8x32xf32, #tpu.memory_space<vmem>>) attributes {dimension_semantics = [#tpu.dimension_semantics<parallel>], iteration_bounds = array<i64: 2>, scalar_prefetch = 0 : i64, scratch_operands = 0 : i64, tpu.core_type = #tpu.core_type<tc>, window_params = [{transform_indices = @transform_0, window_bounds = array<i64: 8, 128>}, {pipeline_mode = #tpu.pipeline_mode<synchronous>, transform_indices = @transform_1, window_bounds = array<i64: 128, 128>}, {pipeline_mode = #tpu.pipeline_mode<synchronous>, transform_indices = @transform_2, window_bounds = array<i64: 1, 128>}, {pipeline_mode = #tpu.pipeline_mode<synchronous>, transform_indices = @transform_3, window_bounds = array<i64: 128, 32>}, {pipeline_mode = #tpu.pipeline_mode<synchronous>, transform_indices = @transform_4, window_bounds = array<i64: 1, 32>}, {transform_indices = @transform_5, window_bounds = array<i64: 8, 32>}]} {
    %c0 = arith.constant 0 : index
    %c0_0 = arith.constant 0 : index
    %0 = vector.load %arg1[%c0, %c0_0] : memref<8x128xf32, #tpu.memory_space<vmem>>, vector<8x128xf32>
    %c0_1 = arith.constant 0 : index
    %c0_2 = arith.constant 0 : index
    %1 = vector.load %arg2[%c0_1, %c0_2] : memref<128x128xf32, #tpu.memory_space<vmem>>, vector<128x128xf32>
    %cst = arith.constant dense<0.000000e+00> : vector<8x128xf32>
    %2 = tpu.matmul %0, %1, %cst {dimension_numbers = #tpu.dot_dimension_numbers<[1], [0], [0], [1], [0, 0, 1, 1], [], []>} : vector<8x128xf32>, vector<128x128xf32>, vector<8x128xf32> -> vector<8x128xf32>
    %c0_3 = arith.constant 0 : index
    %c0_4 = arith.constant 0 : index
    %3 = vector.load %arg3[%c0_3, %c0_4] : memref<1x128xf32, #tpu.memory_space<vmem>>, vector<1x128xf32>
    %4 = vector.broadcast %3 : vector<1x128xf32> to vector<8x128xf32>
    %5 = arith.addf %2, %4 : vector<8x128xf32>
    %cst_5 = arith.constant 0.000000e+00 : f32
    %6 = vector.broadcast %cst_5 : f32 to vector<8x128xf32>
    %7 = arith.maximumf %5, %6 : vector<8x128xf32>
    %c0_6 = arith.constant 0 : index
    %c0_7 = arith.constant 0 : index
    %8 = vector.load %arg4[%c0_6, %c0_7] : memref<128x32xf32, #tpu.memory_space<vmem>>, vector<128x32xf32>
    %cst_8 = arith.constant dense<0.000000e+00> : vector<8x32xf32>
    %9 = tpu.matmul %7, %8, %cst_8 {dimension_numbers = #tpu.dot_dimension_numbers<[1], [0], [0], [1], [0, 0, 1, 1], [], []>} : vector<8x128xf32>, vector<128x32xf32>, vector<8x32xf32> -> vector<8x32xf32>
    %c0_9 = arith.constant 0 : index
    %c0_10 = arith.constant 0 : index
    %10 = vector.load %arg5[%c0_9, %c0_10] : memref<1x32xf32, #tpu.memory_space<vmem>>, vector<1x32xf32>
    %11 = vector.broadcast %10 : vector<1x32xf32> to vector<8x32xf32>
    %12 = arith.addf %9, %11 : vector<8x32xf32>
    %c0_11 = arith.constant 0 : index
    %c0_12 = arith.constant 0 : index
    %13 = vector.load %arg6[%c0_11, %c0_12] : memref<8x32xf32, #tpu.memory_space<vmem>>, vector<8x32xf32>
    tpu.vector_store %arg6[%c0_11, %c0_12], %12 {strides = array<i32>} : memref<8x32xf32, #tpu.memory_space<vmem>>, vector<8x32xf32>,
    return
  }
  func.func @transform_0(%arg0: i32) -> (i32, i32) {
    %c0_i32 = arith.constant 0 : i32
    %c0_i32_0 = arith.constant 0 : i32
    return %arg0, %c0_i32 : i32, i32
  }
  func.func @transform_1(%arg0: i32) -> (i32, i32) {
    %c0_i32 = arith.constant 0 : i32
    %c0_i32_0 = arith.constant 0 : i32
    %c0_i32_1 = arith.constant 0 : i32
    return %c0_i32, %c0_i32_0 : i32, i32
  }
  func.func @transform_2(%arg0: i32) -> (i32, i32) {
    %c0_i32 = arith.constant 0 : i32
    %c0_i32_0 = arith.constant 0 : i32
    %c0_i32_1 = arith.constant 0 : i32
    return %c0_i32, %c0_i32_0 : i32, i32
  }
  func.func @transform_3(%arg0: i32) -> (i32, i32) {
    %c0_i32 = arith.constant 0 : i32
    %c0_i32_0 = arith.constant 0 : i32
    %c0_i32_1 = arith.constant 0 : i32
    return %c0_i32, %c0_i32_0 : i32, i32
  }
  func.func @transform_4(%arg0: i32) -> (i32, i32) {
    %c0_i32 = arith.constant 0 : i32
    %c0_i32_0 = arith.constant 0 : i32
    %c0_i32_1 = arith.constant 0 : i32
    return %c0_i32, %c0_i32_0 : i32, i32
  }
  func.func @transform_5(%arg0: i32) -> (i32, i32) {
    %c0_i32 = arith.constant 0 : i32
    %c0_i32_0 = arith.constant 0 : i32
    return %arg0, %c0_i32 : i32, i32
  }
}

</mosaic_0001>

<llo_original>
// kernel: trigger_generator_forward.1
$region0: #{trigger_generator_forward.1}
  #allocation0 [shape = 'u32[]', space=smem, size = 0x4, offset = 0x4, fixed_abs, tag = 'smem constant byte address 0x4 - core index']
  #allocation1 [shape = 'u32[144,128]{1,0:T(1,128)}', space=vmem, size = 0x12000, scoped, tag = 'internal scratch']
  %s0 = inlined_call_operand.vmem [shape: f32[16,128], index: 0, kind: input, shape index: {}]
  %s1 = inlined_call_operand.vmem [shape: f32[128,128], index: 1, kind: input, shape index: {}]
  %s2 = inlined_call_operand.vmem [shape: f32[1,128], index: 2, kind: input, shape index: {}]
  %s3 = inlined_call_operand.vmem [shape: f32[128,32], index: 3, kind: input, shape index: {}]
  %s4 = inlined_call_operand.vmem [shape: f32[1,32], index: 4, kind: input, shape index: {}]
  %s5 = inlined_call_operand.hbm [shape: f32[16,32], index: 5, kind: output, shape index: {}]
  %s6 = sld [smem:[#allocation0]]
  $region53: #{trigger_generator_forward.1} parent=0
    _
  %s8 = ssub.s32 1, %s6
  %s9 = scalar_select 0, %s8, %s6
  $region1: #{trigger_generator_forward.1} parent=0
    #allocation2 [shape = 'u8[8192]{0}', space=vmem, size = 0x2000, scoped, tag = 'output window, operand 0']
    #allocation3 [shape = 's32[2]{0}', space=sflag, size = 0x8, scoped, tag = 'scoped memory for trigger_generator_forward.1']
    %10 = vsyncpa [#allocation3], 0
    %s11 = scalar_lea.sflag [#allocation3], 1
    %12 = vsyncpa %s11, 0
    loop: start=0, step=1, limit=4
    $region2: #{trigger_generator_forward.1} parent=1 // loop_pre_header
      _
    $region3: #{trigger_generator_forward.1} parent=1 // loop_header
      %s14 = sphi 0, %s18
      %p15 = scmp.ge.s32.totalorder %s14, 4
      %s24 = sphi 0, %s26
      %s27 = sphi 0, %s24
      %s28 = sphi 0, %s27
      %s44 = sphi 0, %s28
      %s48 = sphi 0, %s48
      %s50 = sphi 0, %s48
      %s51 = sphi 0, %s50
      %s65 = sphi 0, %s51
      %s69 = sphi 0, %s69
      %s71 = sphi 0, %s69
      %s72 = sphi 0, %s71
      %s86 = sphi 0, %s72
      %s90 = sphi 0, %s90
      %s92 = sphi 0, %s90
      %s93 = sphi 0, %s92
      %s107 = sphi 0, %s93
      %s111 = sphi 0, %s111
      %s113 = sphi 0, %s111
      %s114 = sphi 0, %s113
      %s128 = sphi 0, %s114
      %s134 = sphi 0, %s136
      %s137 = sphi 0, %s134
      %s138 = sphi 0, %s137
      %s154 = sphi 0, %s138
    $region4: #{trigger_generator_forward.1} parent=1 // loop_header_branch
      %17 = sbr.rel (%p15) target = $region8
    $region5: #{trigger_generator_forward.1} parent=1 // loop_body
      %s19 = ssub.s32 %s14, 1
      %s20 = ssub.s32 %s14, 2
      %s21 = sadd.s32 %s14, 1
      %s22 = ssub.s32 %s14, %s21
      %p23 = scmp.eq.s32.totalorder %s22, 0
      %s25 = sadd.s32 %s24, 1
      %s26 = scalar_select %p23, %s24, %s25
      %p29 = pneg %p23
      %p30 = scmp.eq.s32.totalorder %s14, 1
      %p31 = por %p29, %p30
      %p32 = scmp.ne.s32.totalorder %s24, %s27
      %p33 = scmp.eq.s32.totalorder %s14, 0
      %p34 = por %p32, %p33
      %p35 = scmp.ne.s32.totalorder %s24, %s27
      %p36 = scmp.eq.s32.totalorder %s19, 1
      %p37 = por %p35, %p36
      %p38 = scmp.ne.s32.totalorder %s27, %s28
      %p39 = scmp.eq.s32.totalorder %s19, 0
      %p40 = por %p38, %p39
      %p41 = scmp.ne.s32.totalorder %s27, %s28
      %p42 = scmp.eq.s32.totalorder %s20, 1
      %p43 = por %p41, %p42
      %p45 = scmp.ne.s32.totalorder %s28, %s44
      %p46 = scmp.eq.s32.totalorder %s20, 0
      %p47 = por %p45, %p46
      %s49 = sadd.s32 %s48, 1
      %p52 = scmp.eq.s32.totalorder %s14, 1
      %p53 = scmp.ne.s32.totalorder %s48, %s50
      %p54 = scmp.eq.s32.totalorder %s14, 0
      %p55 = por %p53, %p54
      %p56 = scmp.ne.s32.totalorder %s48, %s50
      %p57 = scmp.eq.s32.totalorder %s19, 1
      %p58 = por %p56, %p57
      %p59 = scmp.ne.s32.totalorder %s50, %s51
      %p60 = scmp.eq.s32.totalorder %s19, 0
      %p61 = por %p59, %p60
      %p62 = scmp.ne.s32.totalorder %s50, %s51
      %p63 = scmp.eq.s32.totalorder %s20, 1
      %p64 = por %p62, %p63
      %p66 = scmp.ne.s32.totalorder %s51, %s65
      %p67 = scmp.eq.s32.totalorder %s20, 0
      %p68 = por %p66, %p67
      %s70 = sadd.s32 %s69, 1
      %p73 = scmp.eq.s32.totalorder %s14, 1
      %p74 = scmp.ne.s32.totalorder %s69, %s71
      %p75 = scmp.eq.s32.totalorder %s14, 0
      %p76 = por %p74, %p75
      %p77 = scmp.ne.s32.totalorder %s69, %s71
      %p78 = scmp.eq.s32.totalorder %s19, 1
      %p79 = por %p77, %p78
      %p80 = scmp.ne.s32.totalorder %s71, %s72
      %p81 = scmp.eq.s32.totalorder %s19, 0
      %p82 = por %p80, %p81
      %p83 = scmp.ne.s32.totalorder %s71, %s72
      %p84 = scmp.eq.s32.totalorder %s20, 1
      %p85 = por %p83, %p84
      %p87 = scmp.ne.s32.totalorder %s72, %s86
      %p88 = scmp.eq.s32.totalorder %s20, 0
      %p89 = por %p87, %p88
      %s91 = sadd.s32 %s90, 1
      %p94 = scmp.eq.s32.totalorder %s14, 1
      %p95 = scmp.ne.s32.totalorder %s90, %s92
      %p96 = scmp.eq.s32.totalorder %s14, 0
      %p97 = por %p95, %p96
      %p98 = scmp.ne.s32.totalorder %s90, %s92
      %p99 = scmp.eq.s32.totalorder %s19, 1
      %p100 = por %p98, %p99
      %p101 = scmp.ne.s32.totalorder %s92, %s93
      %p102 = scmp.eq.s32.totalorder %s19, 0
      %p103 = por %p101, %p102
      %p104 = scmp.ne.s32.totalorder %s92, %s93
      %p105 = scmp.eq.s32.totalorder %s20, 1
      %p106 = por %p104, %p105
      %p108 = scmp.ne.s32.totalorder %s93, %s107
      %p109 = scmp.eq.s32.totalorder %s20, 0
      %p110 = por %p108, %p109
      %s112 = sadd.s32 %s111, 1
      %p115 = scmp.eq.s32.totalorder %s14, 1
      %p116 = scmp.ne.s32.totalorder %s111, %s113
      %p117 = scmp.eq.s32.totalorder %s14, 0
      %p118 = por %p116, %p117
      %p119 = scmp.ne.s32.totalorder %s111, %s113
      %p120 = scmp.eq.s32.totalorder %s19, 1
      %p121 = por %p119, %p120
      %p122 = scmp.ne.s32.totalorder %s113, %s114
      %p123 = scmp.eq.s32.totalorder %s19, 0
      %p124 = por %p122, %p123
      %p125 = scmp.ne.s32.totalorder %s113, %s114
      %p126 = scmp.eq.s32.totalorder %s20, 1
      %p127 = por %p125, %p126
      %p129 = scmp.ne.s32.totalorder %s114, %s128
      %p130 = scmp.eq.s32.totalorder %s20, 0
      %p131 = por %p129, %p130
      %s132 = ssub.s32 %s14, %s21
      %p133 = scmp.eq.s32.totalorder %s132, 0
      %s135 = sadd.s32 %s134, 1
      %s136 = scalar_select %p133, %s134, %s135
      %p139 = pneg %p133
      %p140 = scmp.eq.s32.totalorder %s14, 1
      %p141 = por %p139, %p140
      %p142 = scmp.ne.s32.totalorder %s134, %s137
      %p143 = scmp.eq.s32.totalorder %s14, 0
      %p144 = por %p142, %p143
      %p145 = scmp.ne.s32.totalorder %s134, %s137
      %p146 = scmp.eq.s32.totalorder %s19, 1
      %p147 = por %p145, %p146
      %p148 = scmp.ne.s32.totalorder %s137, %s138
      %p149 = scmp.eq.s32.totalorder %s19, 0
      %p150 = por %p148, %p149
      %p151 = scmp.ne.s32.totalorder %s137, %s138
      %p152 = scmp.eq.s32.totalorder %s20, 1
      %p153 = por %p151, %p152
      %p155 = scmp.ne.s32.totalorder %s138, %s154
      %p156 = scmp.eq.s32.totalorder %s20, 0
      %p157 = por %p155, %p156
      %p158 = scmp.le.s32.totalorder 1, %s14
      %p159 = scmp.lt.s32.totalorder %s14, 3
      %p160 = pnand %p158, %p159
      %p161 = pneg %p160
      // Predicated region
      $region9: #{trigger_generator_forward.1} parent=5 // pred_check
        _
      $region10: #{trigger_generator_forward.1} parent=5 // pred_check_branch
        %163 = sbr.rel (%p160) target = $region12
      $region11: #{trigger_generator_forward.1} parent=5 // pred_region
        %s164 = ssub.s32 %s14, 1
        // Predicated region
        $region13: #{trigger_generator_forward.1} parent=11 // pred_check
          %p165 = pneg %p61
        $region14: #{trigger_generator_forward.1} parent=11 // pred_check_branch
          %167 = sbr.rel (%p165) target = $region16
        $region15: #{trigger_generator_forward.1} parent=11 // pred_region
          _
        $region16: #{trigger_generator_forward.1} parent=11 // pred_fallthru
          _
        // Predicated region
        $region17: #{trigger_generator_forward.1} parent=11 // pred_check
          %p168 = pneg %p82
        $region18: #{trigger_generator_forward.1} parent=11 // pred_check_branch
          %170 = sbr.rel (%p168) target = $region20
        $region19: #{trigger_generator_forward.1} parent=11 // pred_region
          _
        $region20: #{trigger_generator_forward.1} parent=11 // pred_fallthru
          _
        // Predicated region
        $region21: #{trigger_generator_forward.1} parent=11 // pred_check
          %p171 = pneg %p103
        $region22: #{trigger_generator_forward.1} parent=11 // pred_check_branch
          %173 = sbr.rel (%p171) target = $region24
        $region23: #{trigger_generator_forward.1} parent=11 // pred_region
          _
        $region24: #{trigger_generator_forward.1} parent=11 // pred_fallthru
          _
        // Predicated region
        $region25: #{trigger_generator_forward.1} parent=11 // pred_check
          %p174 = pneg %p124
        $region26: #{trigger_generator_forward.1} parent=11 // pred_check_branch
          %176 = sbr.rel (%p174) target = $region28
        $region27: #{trigger_generator_forward.1} parent=11 // pred_region
          _
        $region28: #{trigger_generator_forward.1} parent=11 // pred_fallthru
          _
      $region12: #{trigger_generator_forward.1} parent=5 // pred_fallthru
        _
      %p177 = scmp.lt.s32.totalorder %s14, 2
      // Predicated region
      $region29: #{trigger_generator_forward.1} parent=5 // pred_check
        %p178 = pneg %p177
      $region30: #{trigger_generator_forward.1} parent=5 // pred_check_branch
        %180 = sbr.rel (%p178) target = $region32
      $region31: #{trigger_generator_forward.1} parent=5 // pred_region
        // Predicated region
        $region33: #{trigger_generator_forward.1} parent=31 // pred_check
          %p181 = pneg %p34
        $region34: #{trigger_generator_forward.1} parent=31 // pred_check_branch
          %183 = sbr.rel (%p181) target = $region36
        $region35: #{trigger_generator_forward.1} parent=31 // pred_region
          %p184 = scmp.lt.s32.totalorder %s14, 1
          %s185 = scalar_select %p184, %s14, 1
          %s186 = smul.addr %s185, 8
          %s187 = scalar_lea.vmem %s0, %s186
        $region36: #{trigger_generator_forward.1} parent=31 // pred_fallthru
          _
      $region32: #{trigger_generator_forward.1} parent=5 // pred_fallthru
        _
      %p188 = scmp.le.s32.totalorder 1, %s14
      %p189 = scmp.lt.s32.totalorder %s14, 3
      %p190 = pnand %p188, %p189
      %p191 = pneg %p190
      // Predicated region
      $region37: #{trigger_generator_forward.1} parent=5 // pred_check
        _
      $region38: #{trigger_generator_forward.1} parent=5 // pred_check_branch
        %193 = sbr.rel (%p190) target = $region40
      $region39: #{trigger_generator_forward.1} parent=5 // pred_region
        %s194 = ssub.s32 %s14, 1
        %p195 = scmp.lt.s32.totalorder %s19, 1
        %s196 = scalar_select %p195, %s19, 1
        %s197 = smul.addr %s196, 8
        %s198 = scalar_lea.vmem %s0, %s197
        %p199 = pneg %p40
        %p200 = pneg %p37
        %p201 = pneg %p61
        %p202 = pneg %p58
        %p203 = pneg %p82
        %p204 = pneg %p79
        %p205 = pneg %p103
        %p206 = pneg %p100
        %p207 = pneg %p124
        %p208 = pneg %p121
        %p209 = pneg %p150
        %p210 = pneg %p147
        %s211 = sand.u32 %s137, 1
        %s212 = scalar_lea.sflag [#allocation3], %s211
        %s213 = sand.u32 %s137, 1
        %s214 = smul.addr %s213, 8
        %s215 = scalar_lea.vmem [#allocation2], %s214
        %p216 = scmp.lt.s32.totalorder %s19, 1
        %s217 = scalar_select %p216, %s19, 1
        %s218 = smul.addr %s217, 8
        %s219 = scalar_lea.vmem %s0, %s218
        %v220 = vld [vmem:[%s219] sm:$0xff]
        %v221 = vld [vmem:[%s1] sm:$0xff]
        %v222 = vld [vmem:[%s1 + $0x8] sm:$0xff]
        %v223 = vld [vmem:[%s1 + $0x10] sm:$0xff]
        %v224 = vld [vmem:[%s1 + $0x18] sm:$0xff]
        %v225 = vld [vmem:[%s1 + $0x20] sm:$0xff]
        %v226 = vld [vmem:[%s1 + $0x28] sm:$0xff]
        %v227 = vld [vmem:[%s1 + $0x30] sm:$0xff]
        %v228 = vld [vmem:[%s1 + $0x38] sm:$0xff]
        %v229 = vld [vmem:[%s1 + $0x40] sm:$0xff]
        %v230 = vld [vmem:[%s1 + $0x48] sm:$0xff]
        %v231 = vld [vmem:[%s1 + $0x50] sm:$0xff]
        %v232 = vld [vmem:[%s1 + $0x58] sm:$0xff]
        %v233 = vld [vmem:[%s1 + $0x60] sm:$0xff]
        %v234 = vld [vmem:[%s1 + $0x68] sm:$0xff]
        %v235 = vld [vmem:[%s1 + $0x70] sm:$0xff]
        %v236 = vld [vmem:[%s1 + $0x78] sm:$0xff]
        %v237 = vld [vmem:[%s2] sm:$0x1]
        %v239 = vlaneseq
        %v240 = vshrl.u32 %v239, 7
        %v241 = vsub.s32 0, %v240
        %v242 = vrot.slane %v237, %v241
        %244 = vmatprep.subr.mxu0 0.0
        %245 = vmatpush1.msra.mxu0 %v221
        %246 = vmatprep.subr.mxu0 0.0
        %247 = vmatpush1.msra.mxu0 %v222
        %248 = vmatprep.subr.mxu0 0.0
        %249 = vmatpush1.msra.mxu0 %v223
        %250 = vmatprep.subr.mxu0 0.0
        %251 = vmatpush1.msra.mxu0 %v224
        %252 = vmatprep.subr.mxu0 0.0
        %253 = vmatpush1.msra.mxu0 %v225
        %254 = vmatprep.subr.mxu0 0.0
        %255 = vmatpush1.msra.mxu0 %v226
        %256 = vmatprep.subr.mxu0 0.0
        %257 = vmatpush1.msra.mxu0 %v227
        %258 = vmatprep.subr.mxu0 0.0
        %259 = vmatpush1.msra.mxu0 %v228
        %260 = vmatprep.subr.mxu0 0.0
        %261 = vmatpush1.msra.mxu0 %v229
        %262 = vmatprep.subr.mxu0 0.0
        %263 = vmatpush1.msra.mxu0 %v230
        %264 = vmatprep.subr.mxu0 0.0
        %265 = vmatpush1.msra.mxu0 %v231
        %266 = vmatprep.subr.mxu0 0.0
        %267 = vmatpush1.msra.mxu0 %v232
        %268 = vmatprep.subr.mxu0 0.0
        %269 = vmatpush1.msra.mxu0 %v233
        %270 = vmatprep.subr.mxu0 0.0
        %271 = vmatpush1.msra.mxu0 %v234
        %272 = vmatprep.subr.mxu0 0.0
        %273 = vmatpush1.msra.mxu0 %v235
        %274 = vmatprep.subr.mxu0 0.0
        %275 = vmatpush1.msra.mxu0 %v236
        %276 = vmatprep.subr.mxu0 0.0
        %277 = vmatpush1.msra.mxu0 0.0
        %278 = vmatprep.subr.mxu0 0.0
        %279 = vmatpush1.msra.mxu0 0.0
        %280 = vmatprep.subr.mxu0 0.0
        %281 = vmatpush1.msra.mxu0 0.0
        %282 = vmatprep.subr.mxu0 0.0
        %283 = vmatpush1.msra.mxu0 0.0
        %284 = vmatprep.subr.mxu0 0.0
        %285 = vmatpush1.msra.mxu0 0.0
        %286 = vmatprep.subr.mxu0 0.0
        %287 = vmatpush1.msra.mxu0 0.0
        %288 = vmatprep.subr.mxu0 0.0
        %289 = vmatpush1.msra.mxu0 0.0
        %290 = vmatprep.subr.mxu0 0.0
        %291 = vmatpush1.msra.mxu0 0.0
        %292 = vmatprep.subr.mxu0 0.0
        %293 = vmatpush1.msra.mxu0 0.0
        %294 = vmatprep.subr.mxu0 0.0
        %295 = vmatpush1.msra.mxu0 0.0
        %296 = vmatprep.subr.mxu0 0.0
        %297 = vmatpush1.msra.mxu0 0.0
        %298 = vmatprep.subr.mxu0 0.0
        %299 = vmatpush1.msra.mxu0 0.0
        %300 = vmatprep.subr.mxu0 0.0
        %301 = vmatpush1.msra.mxu0 0.0
        %302 = vmatprep.subr.mxu0 0.0
        %303 = vmatpush1.msra.mxu0 0.0
        %304 = vmatprep.subr.mxu0 0.0
        %305 = vmatpush1.msra.mxu0 0.0
        %306 = vmatprep.subr.mxu0 0.0
        %307 = vmatpush1.msra.mxu0 0.0
        %308 = vmatprep.mubr.f32.mxu0 0.0
        %309 = vmatmul.mubr.f32.gmra.mrb[0].mxu0 %v220
        %v310 = vpop.f32.mrb[0].mxu0
        %v311 = vadd.f32 %v242, %v310
        %v312 = vpop.f32.mrb[0].mxu0
        %313 = vdwg.mxu0
        %v314 = vmax.f32 %v311, 0.0
        %v315 = vld [vmem:[%s3] sm:$0xff]
        %v316 = vld [vmem:[%s3 + $0x8] sm:$0xff]
        %v317 = vld [vmem:[%s3 + $0x10] sm:$0xff]
        %v318 = vld [vmem:[%s3 + $0x18] sm:$0xff]
        %v319 = vld [vmem:[%s3 + $0x20] sm:$0xff]
        %v320 = vld [vmem:[%s3 + $0x28] sm:$0xff]
        %v321 = vld [vmem:[%s3 + $0x30] sm:$0xff]
        %v322 = vld [vmem:[%s3 + $0x38] sm:$0xff]
        %v323 = vld [vmem:[%s3 + $0x40] sm:$0xff]
        %v324 = vld [vmem:[%s3 + $0x48] sm:$0xff]
        %v325 = vld [vmem:[%s3 + $0x50] sm:$0xff]
        %v326 = vld [vmem:[%s3 + $0x58] sm:$0xff]
        %v327 = vld [vmem:[%s3 + $0x60] sm:$0xff]
        %v328 = vld [vmem:[%s3 + $0x68] sm:$0xff]
        %v329 = vld [vmem:[%s3 + $0x70] sm:$0xff]
        %v330 = vld [vmem:[%s3 + $0x78] sm:$0xff]
        %v331 = vld [vmem:[%s4] sm:$0x1]
        %v333 = vlaneseq
        %v334 = vshrl.u32 %v333, 7
        %v335 = vsub.s32 0, %v334
        %v336 = vrot.slane %v331, %v335
        %338 = vmatprep.subr.mxu0 0.0
        %339 = vmatpush1.msra.mxu0 %v315
        %340 = vmatprep.subr.mxu0 0.0
        %341 = vmatpush1.msra.mxu0 %v316
        %342 = vmatprep.subr.mxu0 0.0
        %343 = vmatpush1.msra.mxu0 %v317
        %344 = vmatprep.subr.mxu0 0.0
        %345 = vmatpush1.msra.mxu0 %v318
        %346 = vmatprep.subr.mxu0 0.0
        %347 = vmatpush1.msra.mxu0 %v319
        %348 = vmatprep.subr.mxu0 0.0
        %349 = vmatpush1.msra.mxu0 %v320
        %350 = vmatprep.subr.mxu0 0.0
        %351 = vmatpush1.msra.mxu0 %v321
        %352 = vmatprep.subr.mxu0 0.0
        %353 = vmatpush1.msra.mxu0 %v322
        %354 = vmatprep.subr.mxu0 0.0
        %355 = vmatpush1.msra.mxu0 %v323
        %356 = vmatprep.subr.mxu0 0.0
        %357 = vmatpush1.msra.mxu0 %v324
        %358 = vmatprep.subr.mxu0 0.0
        %359 = vmatpush1.msra.mxu0 %v325
        %360 = vmatprep.subr.mxu0 0.0
        %361 = vmatpush1.msra.mxu0 %v326
        %362 = vmatprep.subr.mxu0 0.0
        %363 = vmatpush1.msra.mxu0 %v327
        %364 = vmatprep.subr.mxu0 0.0
        %365 = vmatpush1.msra.mxu0 %v328
        %366 = vmatprep.subr.mxu0 0.0
        %367 = vmatpush1.msra.mxu0 %v329
        %368 = vmatprep.subr.mxu0 0.0
        %369 = vmatpush1.msra.mxu0 %v330
        %370 = vmatprep.subr.mxu0 0.0
        %371 = vmatpush1.msra.mxu0 0.0
        %372 = vmatprep.subr.mxu0 0.0
        %373 = vmatpush1.msra.mxu0 0.0
        %374 = vmatprep.subr.mxu0 0.0
        %375 = vmatpush1.msra.mxu0 0.0
        %376 = vmatprep.subr.mxu0 0.0
        %377 = vmatpush1.msra.mxu0 0.0
        %378 = vmatprep.subr.mxu0 0.0
        %379 = vmatpush1.msra.mxu0 0.0
        %380 = vmatprep.subr.mxu0 0.0
        %381 = vmatpush1.msra.mxu0 0.0
        %382 = vmatprep.subr.mxu0 0.0
        %383 = vmatpush1.msra.mxu0 0.0
        %384 = vmatprep.subr.mxu0 0.0
        %385 = vmatpush1.msra.mxu0 0.0
        %386 = vmatprep.subr.mxu0 0.0
        %387 = vmatpush1.msra.mxu0 0.0
        %388 = vmatprep.subr.mxu0 0.0
        %389 = vmatpush1.msra.mxu0 0.0
        %390 = vmatprep.subr.mxu0 0.0
        %391 = vmatpush1.msra.mxu0 0.0
        %392 = vmatprep.subr.mxu0 0.0
        %393 = vmatpush1.msra.mxu0 0.0
        %394 = vmatprep.subr.mxu0 0.0
        %395 = vmatpush1.msra.mxu0 0.0
        %396 = vmatprep.subr.mxu0 0.0
        %397 = vmatpush1.msra.mxu0 0.0
        %398 = vmatprep.subr.mxu0 0.0
        %399 = vmatpush1.msra.mxu0 0.0
        %400 = vmatprep.subr.mxu0 0.0
        %401 = vmatpush1.msra.mxu0 0.0
        %402 = vmatprep.mubr.f32.mxu0 0.0
        %403 = vmatmul.mubr.f32.gmra.mrb[0].mxu0 %v314
        %v404 = vpop.f32.mrb[0].mxu0
        %v405 = vadd.f32 %v336, %v404
        %v406 = vpop.f32.mrb[0].mxu0
        %407 = vdwg.mxu0
        %vm408 = vcmask 261120
        %409 = vst.msk [vmem:[%s215] sm:$0xff] %vm408, %v405
        %s410 = sand.u32 %s137, 1
        %s411 = scalar_lea.sflag [#allocation3], %s410
        %s412 = sand.u32 %s137, 1
        %s413 = smul.addr %s412, 8
        %s414 = scalar_lea.vmem [#allocation2], %s413
        // Predicated region
        $region41: #{trigger_generator_forward.1} parent=39 // pred_check
          %p415 = pneg %p147
        $region42: #{trigger_generator_forward.1} parent=39 // pred_check_branch
          %417 = sbr.rel (%p415) target = $region44
        $region43: #{trigger_generator_forward.1} parent=39 // pred_region
          %s419 = ssub.s32 128, 128
          %420 = vsyncadd %s411, %s419
          %s421 = smul.addr %s19, 128
          %s422 = scalar_lea.hbm %s5, %s421
          %s424 = sshll.u32 %s414, 4
          %s425 = int_to_ptr.vmem [resolvable:$true] %s424
          %427 = dma.vmem_to_hbm [thread:$0]  %s425, 128, %s422, %s411
        $region44: #{trigger_generator_forward.1} parent=39 // pred_fallthru
          _
      $region40: #{trigger_generator_forward.1} parent=5 // pred_fallthru
        _
      %p428 = scmp.le.s32.totalorder 2, %s14
      // Predicated region
      $region45: #{trigger_generator_forward.1} parent=5 // pred_check
        %p429 = pneg %p428
      $region46: #{trigger_generator_forward.1} parent=5 // pred_check_branch
        %431 = sbr.rel (%p429) target = $region48
      $region47: #{trigger_generator_forward.1} parent=5 // pred_region
        %s432 = ssub.s32 %s14, 2
        // Predicated region
        $region49: #{trigger_generator_forward.1} parent=47 // pred_check
          %p433 = pneg %p153
        $region50: #{trigger_generator_forward.1} parent=47 // pred_check_branch
          %435 = sbr.rel (%p433) target = $region52
        $region51: #{trigger_generator_forward.1} parent=47 // pred_region
          %s436 = sand.u32 %s138, 1
          %s437 = scalar_lea.sflag [#allocation3], %s436
          %s438 = sand.u32 %s138, 1
          %s439 = smul.addr %s438, 8
          %s440 = scalar_lea.vmem [#allocation2], %s439
          %441 = dma.done %s437, 128
        $region52: #{trigger_generator_forward.1} parent=47 // pred_fallthru
          _
      $region48: #{trigger_generator_forward.1} parent=5 // pred_fallthru
        _
    $region6: #{trigger_generator_forward.1} parent=1 // loop_footer
      %s18 = sadd.s32 1, %s14
    $region7: #{trigger_generator_forward.1} parent=1 // loop_footer_branch
      %13 = sbr.rel target = $region3
    $region8: #{trigger_generator_forward.1} parent=1 // loop_exit
      _
    %442 = vsyncpa [#allocation3], 1
    %s443 = scalar_lea.sflag [#allocation3], 1
    %444 = vsyncpa %s443, 1

</llo_original>
